<compile_context>
chip_gen: v7x
topology: tpu7x:2x2x1
jax: 0.10.0
libtpu: 0.0.40
codegen_flags: <defaults>
</compile_context>

<pallas_src>
import math

import jax
import jax.numpy as jnp
from jax.experimental import pallas as pl
from jax.experimental.pallas import tpu as pltpu


def _mlp_kernel(x_ref, w1_ref, b1_ref, w2_ref, b2_ref, w3_ref, b3_ref, o_ref):
    x = x_ref[...]

    # fc1 + ReLU
    h1 = jnp.dot(x, w1_ref[...], preferred_element_type=jnp.float32) + b1_ref[...]
    h1 = jnp.maximum(h1, 0.0)

    # Dropout(p=0.3): eval-mode semantics (identity).
    # TODO(synk): training-mode stochastic dropout (pltpu.prng_seed /
    # pltpu.prng_random_bits with 1/(1-p) scaling) not wired up.

    # fc2 + ReLU
    h2 = jnp.dot(h1, w2_ref[...], preferred_element_type=jnp.float32) + b2_ref[...]
    h2 = jnp.maximum(h2, 0.0)

    # fc3 (logits, no activation)
    y = jnp.dot(h2, w3_ref[...], preferred_element_type=jnp.float32) + b3_ref[...]
    o_ref[...] = y.astype(o_ref.dtype)


def accident_severity_forward(x, params, *, tile_b=1024):
    """x: [B, 9] float32.  params: dict of transposed weights / biases.

    tile_b is the batch tile per grid step; sweep 512-2048 for large B.
    Arbitrary B is supported: the batch is padded up to a tile multiple and
    the pad rows are sliced off the result.
    """
    B, F = x.shape
    assert F == 9

    w1, b1 = params["w1"], params["b1"]   # [9,128],  [1,128]
    w2, b2 = params["w2"], params["b2"]   # [128,64], [1,64]
    w3, b3 = params["w3"], params["b3"]   # [64,4],   [1,4]

    # Effective batch tile: multiple of 8 (sublane), no bigger than needed.
    tile_b_eff = min(tile_b, pl.cdiv(B, 8) * 8)
    tile_b_eff = max(8, (tile_b_eff // 8) * 8)
    B_pad = pl.cdiv(B, tile_b_eff) * tile_b_eff
    if B_pad != B:
        x = jnp.pad(x, ((0, B_pad - B), (0, 0)))

    grid = (B_pad // tile_b_eff,)
    full = lambda i: (0, 0)  # grid-invariant blocks: not re-DMA'd per step

    param_bytes = sum(int(p.size) * p.dtype.itemsize for p in params.values())
    cost = pl.CostEstimate(
        flops=2 * B_pad * (9 * 128 + 128 * 64 + 64 * 4),
        transcendentals=0,
        bytes_accessed=B_pad * (9 + 4) * 4 + param_bytes,
    )

    out = pl.pallas_call(
        _mlp_kernel,
        out_shape=jax.ShapeDtypeStruct((B_pad, 4), jnp.float32),
        grid_spec=pltpu.PrefetchScalarGridSpec(
            num_scalar_prefetch=0,
            grid=grid,
            in_specs=[
                pl.BlockSpec((tile_b_eff, F), lambda i: (i, 0)),   # x tile
                pl.BlockSpec(w1.shape, full),
                pl.BlockSpec(b1.shape, full),
                pl.BlockSpec(w2.shape, full),
                pl.BlockSpec(b2.shape, full),
                pl.BlockSpec(w3.shape, full),
                pl.BlockSpec(b3.shape, full),
            ],
            out_specs=pl.BlockSpec((tile_b_eff, 4), lambda i: (i, 0)),
        ),
        compiler_params=pltpu.CompilerParams(
            dimension_semantics=("parallel",)       # megacore-shard batch axis
        ),
        cost_estimate=cost,
    )(x, w1, b1, w2, b2, w3, b3)

    return out[:B] if B_pad != B else out


def init_params(key):
    """Deterministic init mirroring the PyTorch module's __init__ shapes.

    fc1 / fc2 weights: xavier_uniform_;  fc3 weight & all biases: PyTorch
    Linear default (uniform +/- 1/sqrt(fan_in)).  Weights are stored
    pre-transposed as [in, out]; biases as [1, out] for 2-D broadcast.
    """
    ks = jax.random.split(key, 6)

    def xavier(k, fan_in, fan_out):
        bound = math.sqrt(6.0 / (fan_in + fan_out))
        return jax.random.uniform(k, (fan_in, fan_out), jnp.float32, -bound, bound)

    def default_w(k, fan_in, fan_out):
        bound = 1.0 / math.sqrt(fan_in)
        return jax.random.uniform(k, (fan_in, fan_out), jnp.float32, -bound, bound)

    def default_b(k, fan_in, fan_out):
        bound = 1.0 / math.sqrt(fan_in)
        return jax.random.uniform(k, (1, fan_out), jnp.float32, -bound, bound)

    return {
        "w1": xavier(ks[0], 9, 128),   "b1": default_b(ks[1], 9, 128),
        "w2": xavier(ks[2], 128, 64),  "b2": default_b(ks[3], 128, 64),
        "w3": default_w(ks[4], 64, 4), "b3": default_b(ks[5], 64, 4),
    }


def reference_forward(x, params):
    h1 = jnp.maximum(x @ params["w1"] + params["b1"], 0.0)
    h2 = jnp.maximum(h1 @ params["w2"] + params["b2"], 0.0)
    return h2 @ params["w3"] + params["b3"]


if __name__ == "__main__":
    key = jax.random.PRNGKey(0)
    k_param, k_x = jax.random.split(key)

    params = init_params(k_param)

    # Small deterministic batch; 50 is deliberately NOT a multiple of 8 to
    # exercise the padding / tile-rounding path.
    x = jax.random.normal(k_x, (50, 9), jnp.float32)

    out = accident_severity_forward(x, params)
    out = jax.block_until_ready(out)

    ref = reference_forward(x, params)
    assert out.shape == (50, 4)
    assert jnp.allclose(out, ref, atol=1e-5, rtol=1e-5)

    print("KERNEL_OK")
</pallas_src>

<mosaic_0001>
module attributes {stable_mosaic.version = 11 : i64} {
  func.func @_mlp_kernel(%arg0: i32, %arg1: memref<56x9xf32, #tpu.memory_space<vmem>>, %arg2: memref<9x128xf32, #tpu.memory_space<vmem>>, %arg3: memref<1x128xf32, #tpu.memory_space<vmem>>, %arg4: memref<128x64xf32, #tpu.memory_space<vmem>>, %arg5: memref<1x64xf32, #tpu.memory_space<vmem>>, %arg6: memref<64x4xf32, #tpu.memory_space<vmem>>, %arg7: memref<1x4xf32, #tpu.memory_space<vmem>>, %arg8: memref<56x4xf32, #tpu.memory_space<vmem>>) attributes {dimension_semantics = [#tpu.dimension_semantics<parallel>], iteration_bounds = array<i64: 1>, scalar_prefetch = 0 : i64, scratch_operands = 0 : i64, tpu.core_type = #tpu.core_type<tc>, window_params = [{transform_indices = @transform_0, window_bounds = array<i64: 56, 9>}, {pipeline_mode = #tpu.pipeline_mode<synchronous>, transform_indices = @transform_1, window_bounds = array<i64: 9, 128>}, {pipeline_mode = #tpu.pipeline_mode<synchronous>, transform_indices = @transform_2, window_bounds = array<i64: 1, 128>}, {pipeline_mode = #tpu.pipeline_mode<synchronous>, transform_indices = @transform_3, window_bounds = array<i64: 128, 64>}, {pipeline_mode = #tpu.pipeline_mode<synchronous>, transform_indices = @transform_4, window_bounds = array<i64: 1, 64>}, {pipeline_mode = #tpu.pipeline_mode<synchronous>, transform_indices = @transform_5, window_bounds = array<i64: 64, 4>}, {pipeline_mode = #tpu.pipeline_mode<synchronous>, transform_indices = @transform_6, window_bounds = array<i64: 1, 4>}, {transform_indices = @transform_7, window_bounds = array<i64: 56, 4>}]} {
    %c0 = arith.constant 0 : index
    %c0_0 = arith.constant 0 : index
    %0 = vector.load %arg1[%c0, %c0_0] : memref<56x9xf32, #tpu.memory_space<vmem>>, vector<56x9xf32>
    %c0_1 = arith.constant 0 : index
    %c0_2 = arith.constant 0 : index
    %1 = vector.load %arg2[%c0_1, %c0_2] : memref<9x128xf32, #tpu.memory_space<vmem>>, vector<9x128xf32>
    %cst = arith.constant dense<0.000000e+00> : vector<56x128xf32>
    %2 = tpu.matmul %0, %1, %cst {dimension_numbers = #tpu.dot_dimension_numbers<[1], [0], [0], [1], [0, 0, 1, 1], [], []>} : vector<56x9xf32>, vector<9x128xf32>, vector<56x128xf32> -> vector<56x128xf32>
    %c0_3 = arith.constant 0 : index
    %c0_4 = arith.constant 0 : index
    %3 = vector.load %arg3[%c0_3, %c0_4] : memref<1x128xf32, #tpu.memory_space<vmem>>, vector<1x128xf32>
    %4 = vector.broadcast %3 : vector<1x128xf32> to vector<56x128xf32>
    %5 = arith.addf %2, %4 : vector<56x128xf32>
    %cst_5 = arith.constant 0.000000e+00 : f32
    %6 = vector.broadcast %cst_5 : f32 to vector<56x128xf32>
    %7 = arith.maximumf %5, %6 : vector<56x128xf32>
    %c0_6 = arith.constant 0 : index
    %c0_7 = arith.constant 0 : index
    %8 = vector.load %arg4[%c0_6, %c0_7] : memref<128x64xf32, #tpu.memory_space<vmem>>, vector<128x64xf32>
    %cst_8 = arith.constant dense<0.000000e+00> : vector<56x64xf32>
    %9 = tpu.matmul %7, %8, %cst_8 {dimension_numbers = #tpu.dot_dimension_numbers<[1], [0], [0], [1], [0, 0, 1, 1], [], []>} : vector<56x128xf32>, vector<128x64xf32>, vector<56x64xf32> -> vector<56x64xf32>
    %c0_9 = arith.constant 0 : index
    %c0_10 = arith.constant 0 : index
    %10 = vector.load %arg5[%c0_9, %c0_10] : memref<1x64xf32, #tpu.memory_space<vmem>>, vector<1x64xf32>
    %11 = vector.broadcast %10 : vector<1x64xf32> to vector<56x64xf32>
    %12 = arith.addf %9, %11 : vector<56x64xf32>
    %cst_11 = arith.constant 0.000000e+00 : f32
    %13 = vector.broadcast %cst_11 : f32 to vector<56x64xf32>
    %14 = arith.maximumf %12, %13 : vector<56x64xf32>
    %c0_12 = arith.constant 0 : index
    %c0_13 = arith.constant 0 : index
    %15 = vector.load %arg6[%c0_12, %c0_13] : memref<64x4xf32, #tpu.memory_space<vmem>>, vector<64x4xf32>
    %cst_14 = arith.constant dense<0.000000e+00> : vector<56x4xf32>
    %16 = tpu.matmul %14, %15, %cst_14 {dimension_numbers = #tpu.dot_dimension_numbers<[1], [0], [0], [1], [0, 0, 1, 1], [], []>} : vector<56x64xf32>, vector<64x4xf32>, vector<56x4xf32> -> vector<56x4xf32>
    %c0_15 = arith.constant 0 : index
    %c0_16 = arith.constant 0 : index
    %17 = vector.load %arg7[%c0_15, %c0_16] : memref<1x4xf32, #tpu.memory_space<vmem>>, vector<1x4xf32>
    %18 = vector.broadcast %17 : vector<1x4xf32> to vector<56x4xf32>
    %19 = arith.addf %16, %18 : vector<56x4xf32>
    %c0_17 = arith.constant 0 : index
    %c0_18 = arith.constant 0 : index
    %20 = vector.load %arg8[%c0_17, %c0_18] : memref<56x4xf32, #tpu.memory_space<vmem>>, vector<56x4xf32>
    tpu.vector_store %arg8[%c0_17, %c0_18], %19 {strides = array<i32>} : memref<56x4xf32, #tpu.memory_space<vmem>>, vector<56x4xf32>,
    return
  }
  func.func @transform_0(%arg0: i32) -> (i32, i32) {
    %c0_i32 = arith.constant 0 : i32
    %c0_i32_0 = arith.constant 0 : i32
    return %arg0, %c0_i32 : i32, i32
  }
  func.func @transform_1(%arg0: i32) -> (i32, i32) {
    %c0_i32 = arith.constant 0 : i32
    %c0_i32_0 = arith.constant 0 : i32
    %c0_i32_1 = arith.constant 0 : i32
    return %c0_i32, %c0_i32_0 : i32, i32
  }
  func.func @transform_2(%arg0: i32) -> (i32, i32) {
    %c0_i32 = arith.constant 0 : i32
    %c0_i32_0 = arith.constant 0 : i32
    %c0_i32_1 = arith.constant 0 : i32
    return %c0_i32, %c0_i32_0 : i32, i32
  }
  func.func @transform_3(%arg0: i32) -> (i32, i32) {
    %c0_i32 = arith.constant 0 : i32
    %c0_i32_0 = arith.constant 0 : i32
    %c0_i32_1 = arith.constant 0 : i32
    return %c0_i32, %c0_i32_0 : i32, i32
  }
  func.func @transform_4(%arg0: i32) -> (i32, i32) {
    %c0_i32 = arith.constant 0 : i32
    %c0_i32_0 = arith.constant 0 : i32
    %c0_i32_1 = arith.constant 0 : i32
    return %c0_i32, %c0_i32_0 : i32, i32
  }
  func.func @transform_5(%arg0: i32) -> (i32, i32) {
    %c0_i32 = arith.constant 0 : i32
    %c0_i32_0 = arith.constant 0 : i32
    %c0_i32_1 = arith.constant 0 : i32
    return %c0_i32, %c0_i32_0 : i32, i32
  }
  func.func @transform_6(%arg0: i32) -> (i32, i32) {
    %c0_i32 = arith.constant 0 : i32
    %c0_i32_0 = arith.constant 0 : i32
    %c0_i32_1 = arith.constant 0 : i32
    return %c0_i32, %c0_i32_0 : i32, i32
  }
  func.func @transform_7(%arg0: i32) -> (i32, i32) {
    %c0_i32 = arith.constant 0 : i32
    %c0_i32_0 = arith.constant 0 : i32
    return %arg0, %c0_i32 : i32, i32
  }
}

</mosaic_0001>

<llo_original>
// kernel: tpu_custom_call.1
$region0: #{tpu_custom_call.1}
  #allocation0 [shape = 'u32[]', space=smem, size = 0x4, offset = 0x4, fixed_abs, tag = 'smem constant byte address 0x4 - core index']
  #allocation1 [shape = 'u32[144,128]{1,0:T(1,128)}', space=vmem, size = 0x12000, scoped, tag = 'internal scratch']
  %s0 = inlined_call_operand.vmem [shape: f32[56,9], index: 0, kind: input, shape index: {}]
  %s1 = inlined_call_operand.vmem [shape: f32[9,128], index: 1, kind: input, shape index: {}]
  %s2 = inlined_call_operand.vmem [shape: f32[1,128], index: 2, kind: input, shape index: {}]
  %s3 = inlined_call_operand.vmem [shape: f32[128,64], index: 3, kind: input, shape index: {}]
  %s4 = inlined_call_operand.vmem [shape: f32[1,64], index: 4, kind: input, shape index: {}]
  %s5 = inlined_call_operand.vmem [shape: f32[64,4], index: 5, kind: input, shape index: {}]
  %s6 = inlined_call_operand.vmem [shape: f32[1,4], index: 6, kind: input, shape index: {}]
  %s7 = inlined_call_operand.vmem [shape: f32[56,4], index: 7, kind: output, shape index: {}]
  %s8 = sld [smem:[#allocation0]]
  $region38: #{tpu_custom_call.1} parent=0
    _
  %s10 = ssub.s32 1, %s8
  %s11 = scalar_select 0, %s10, %s8
  // Predicated region
  $region2: #{tpu_custom_call.1} parent=0 // pred_check
    _
  $region3: #{tpu_custom_call.1} parent=0 // pred_check_branch
    %13 = sbr.rel (0) target = $region5
  $region4: #{tpu_custom_call.1} parent=0 // pred_region
    _
  $region5: #{tpu_custom_call.1} parent=0 // pred_fallthru
    _
  // Predicated region
  $region6: #{tpu_custom_call.1} parent=0 // pred_check
    _
  $region7: #{tpu_custom_call.1} parent=0 // pred_check_branch
    %15 = sbr.rel (0) target = $region9
  $region8: #{tpu_custom_call.1} parent=0 // pred_region
    _
  $region9: #{tpu_custom_call.1} parent=0 // pred_fallthru
    _
  // Predicated region
  $region10: #{tpu_custom_call.1} parent=0 // pred_check
    _
  $region11: #{tpu_custom_call.1} parent=0 // pred_check_branch
    %17 = sbr.rel (0) target = $region13
  $region12: #{tpu_custom_call.1} parent=0 // pred_region
    _
  $region13: #{tpu_custom_call.1} parent=0 // pred_fallthru
    _
  // Predicated region
  $region14: #{tpu_custom_call.1} parent=0 // pred_check
    _
  $region15: #{tpu_custom_call.1} parent=0 // pred_check_branch
    %19 = sbr.rel (0) target = $region17
  $region16: #{tpu_custom_call.1} parent=0 // pred_region
    _
  $region17: #{tpu_custom_call.1} parent=0 // pred_fallthru
    _
  // Predicated region
  $region18: #{tpu_custom_call.1} parent=0 // pred_check
    _
  $region19: #{tpu_custom_call.1} parent=0 // pred_check_branch
    %21 = sbr.rel (0) target = $region21
  $region20: #{tpu_custom_call.1} parent=0 // pred_region
    _
  $region21: #{tpu_custom_call.1} parent=0 // pred_fallthru
    _
  // Predicated region
  $region22: #{tpu_custom_call.1} parent=0 // pred_check
    _
  $region23: #{tpu_custom_call.1} parent=0 // pred_check_branch
    %23 = sbr.rel (0) target = $region25
  $region24: #{tpu_custom_call.1} parent=0 // pred_region
    _
  $region25: #{tpu_custom_call.1} parent=0 // pred_fallthru
    _
  // Predicated region
  $region26: #{tpu_custom_call.1} parent=0 // pred_check
    _
  $region27: #{tpu_custom_call.1} parent=0 // pred_check_branch
    %25 = sbr.rel (0) target = $region29
  $region28: #{tpu_custom_call.1} parent=0 // pred_region
    _
  $region29: #{tpu_custom_call.1} parent=0 // pred_fallthru
    _
  %v26 = vld [vmem:[%s0] sm:$0xff]
  %v27 = vld [vmem:[%s0 + $0x8] sm:$0xff]
  %v28 = vld [vmem:[%s0 + $0x10] sm:$0xff]
  %v29 = vld [vmem:[%s0 + $0x18] sm:$0xff]
  %v30 = vld [vmem:[%s0 + $0x20] sm:$0xff]
  %v31 = vld [vmem:[%s0 + $0x28] sm:$0xff]
  %v32 = vld [vmem:[%s0 + $0x30] sm:$0xff]
  %v33 = vld [vmem:[%s1] sm:$0xff]
  %v34 = vld [vmem:[%s1 + $0x8] sm:$0x1]
  %v35 = vld [vmem:[%s2] sm:$0x1]
  %v37 = vlaneseq
  %v38 = vshrl.u32 %v37, 7
  %v39 = vsub.s32 0, %v38
  %v40 = vrot.slane %v35, %v39
  %vm42 = vcmask 72704
  %v44 = vsel %vm42, %v26, 0
  %v47 = vsel %vm42, %v27, 0
  %v50 = vsel %vm42, %v28, 0
  %v53 = vsel %vm42, %v29, 0
  %v56 = vsel %vm42, %v30, 0
  %v59 = vsel %vm42, %v31, 0
  %v62 = vsel %vm42, %v32, 0
  %vm64 = vcmask 1040384
  %v66 = vsel %vm64, %v34, 0
  %68 = vmatprep.subr.mxu0 0.0
  %69 = vmatpush1.msra.mxu0 %v33
  %70 = vmatprep.subr.mxu0 0.0
  %71 = vmatpush1.msra.mxu0 %v66
  %72 = vmatprep.subr.mxu0 0.0
  %73 = vmatpush1.msra.mxu0 0.0
  %74 = vmatprep.subr.mxu0 0.0
  %75 = vmatpush1.msra.mxu0 0.0
  %76 = vmatprep.subr.mxu0 0.0
  %77 = vmatpush1.msra.mxu0 0.0
  %78 = vmatprep.subr.mxu0 0.0
  %79 = vmatpush1.msra.mxu0 0.0
  %80 = vmatprep.subr.mxu0 0.0
  %81 = vmatpush1.msra.mxu0 0.0
  %82 = vmatprep.subr.mxu0 0.0
  %83 = vmatpush1.msra.mxu0 0.0
  %84 = vmatprep.subr.mxu0 0.0
  %85 = vmatpush1.msra.mxu0 0.0
  %86 = vmatprep.subr.mxu0 0.0
  %87 = vmatpush1.msra.mxu0 0.0
  %88 = vmatprep.subr.mxu0 0.0
  %89 = vmatpush1.msra.mxu0 0.0
  %90 = vmatprep.subr.mxu0 0.0
  %91 = vmatpush1.msra.mxu0 0.0
  %92 = vmatprep.subr.mxu0 0.0
  %93 = vmatpush1.msra.mxu0 0.0
  %94 = vmatprep.subr.mxu0 0.0
  %95 = vmatpush1.msra.mxu0 0.0
  %96 = vmatprep.subr.mxu0 0.0
  %97 = vmatpush1.msra.mxu0 0.0
  %98 = vmatprep.subr.mxu0 0.0
  %99 = vmatpush1.msra.mxu0 0.0
  %100 = vmatprep.subr.mxu0 0.0
  %101 = vmatpush1.msra.mxu0 0.0
  %102 = vmatprep.subr.mxu0 0.0
  %103 = vmatpush1.msra.mxu0 0.0
  %104 = vmatprep.subr.mxu0 0.0
  %105 = vmatpush1.msra.mxu0 0.0
  %106 = vmatprep.subr.mxu0 0.0
  %107 = vmatpush1.msra.mxu0 0.0
  %108 = vmatprep.subr.mxu0 0.0
  %109 = vmatpush1.msra.mxu0 0.0
  %110 = vmatprep.subr.mxu0 0.0
  %111 = vmatpush1.msra.mxu0 0.0
  %112 = vmatprep.subr.mxu0 0.0
  %113 = vmatpush1.msra.mxu0 0.0
  %114 = vmatprep.subr.mxu0 0.0
  %115 = vmatpush1.msra.mxu0 0.0
  %116 = vmatprep.subr.mxu0 0.0
  %117 = vmatpush1.msra.mxu0 0.0
  %118 = vmatprep.subr.mxu0 0.0
  %119 = vmatpush1.msra.mxu0 0.0
  %120 = vmatprep.subr.mxu0 0.0
  %121 = vmatpush1.msra.mxu0 0.0
  %122 = vmatprep.subr.mxu0 0.0
  %123 = vmatpush1.msra.mxu0 0.0
  %124 = vmatprep.subr.mxu0 0.0
  %125 = vmatpush1.msra.mxu0 0.0
  %126 = vmatprep.subr.mxu0 0.0
  %127 = vmatpush1.msra.mxu0 0.0
  %128 = vmatprep.subr.mxu0 0.0
  %129 = vmatpush1.msra.mxu0 0.0
  %130 = vmatprep.subr.mxu0 0.0
  %131 = vmatpush1.msra.mxu0 0.0
  %132 = vmatprep.mubr.f32.mxu0 0.0
  %133 = vmatmul.mubr.f32.gmra.mrb[0].mxu0 %v44
  %v134 = vpop.f32.mrb[0].mxu0
  %v135 = vadd.f32 %v40, %v134
  %v136 = vpop.f32.mrb[0].mxu0
  %137 = vmatprep.mubr.f32.mxu0 0.0
  %138 = vmatmul.mubr.f32.gmra.mrb[0].mxu0 %v47
  %v139 = vpop.f32.mrb[0].mxu0
  %v140 = vadd.f32 %v40, %v139
  %v141 = vpop.f32.mrb[0].mxu0
  %142 = vmatprep.mubr.f32.mxu0 0.0
  %143 = vmatmul.mubr.f32.gmra.mrb[0].mxu0 %v50
  %v144 = vpop.f32.mrb[0].mxu0
  %v145 = vadd.f32 %v40, %v144
  %v146 = vpop.f32.mrb[0].mxu0
  %147 = vmatprep.mubr.f32.mxu0 0.0
  %148 = vmatmul.mubr.f32.gmra.mrb[0].mxu0 %v53
  %v149 = vpop.f32.mrb[0].mxu0
  %v150 = vadd.f32 %v40, %v149
  %v151 = vpop.f32.mrb[0].mxu0
  %152 = vmatprep.mubr.f32.mxu0 0.0
  %153 = vmatmul.mubr.f32.gmra.mrb[0].mxu0 %v56
  %v154 = vpop.f32.mrb[0].mxu0
  %v155 = vadd.f32 %v40, %v154
  %v156 = vpop.f32.mrb[0].mxu0
  %157 = vmatprep.mubr.f32.mxu0 0.0
  %158 = vmatmul.mubr.f32.gmra.mrb[0].mxu0 %v59
  %v159 = vpop.f32.mrb[0].mxu0
  %v160 = vadd.f32 %v40, %v159
  %v161 = vpop.f32.mrb[0].mxu0
  %162 = vmatprep.mubr.f32.mxu0 0.0
  %163 = vmatmul.mubr.f32.gmra.mrb[0].mxu0 %v62
  %v164 = vpop.f32.mrb[0].mxu0
  %v165 = vadd.f32 %v40, %v164
  %v166 = vpop.f32.mrb[0].mxu0
  %167 = vdwg.mxu0
  %v168 = vmax.f32 %v135, 0.0
  %v169 = vmax.f32 %v140, 0.0
  %v170 = vmax.f32 %v145, 0.0
  %v171 = vmax.f32 %v150, 0.0
  %v172 = vmax.f32 %v155, 0.0
  %v173 = vmax.f32 %v160, 0.0
  %v174 = vmax.f32 %v165, 0.0
  %v175 = vld [vmem:[%s3] sm:$0xff]
  %v176 = vld [vmem:[%s3 + $0x8] sm:$0xff]
  %v177 = vld [vmem:[%s3 + $0x10] sm:$0xff]
  %v178 = vld [vmem:[%s3 + $0x18] sm:$0xff]
  %v179 = vld [vmem:[%s3 + $0x20] sm:$0xff]
  %v180 = vld [vmem:[%s3 + $0x28] sm:$0xff]
  %v181 = vld [vmem:[%s3 + $0x30] sm:$0xff]
  %v182 = vld [vmem:[%s3 + $0x38] sm:$0xff]
  %v183 = vld [vmem:[%s3 + $0x40] sm:$0xff]
  %v184 = vld [vmem:[%s3 + $0x48] sm:$0xff]
  %v185 = vld [vmem:[%s3 + $0x50] sm:$0xff]
  %v186 = vld [vmem:[%s3 + $0x58] sm:$0xff]
  %v187 = vld [vmem:[%s3 + $0x60] sm:$0xff]
  %v188 = vld [vmem:[%s3 + $0x68] sm:$0xff]
  %v189 = vld [vmem:[%s3 + $0x70] sm:$0xff]
  %v190 = vld [vmem:[%s3 + $0x78] sm:$0xff]
  %v191 = vld [vmem:[%s4] sm:$0x1]
  %v193 = vlaneseq
  %v194 = vshrl.u32 %v193, 7
  %v195 = vsub.s32 0, %v194
  %v196 = vrot.slane %v191, %v195
  %198 = vmatprep.subr.mxu0 0.0
  %199 = vmatpush1.msra.mxu0 %v175
  %200 = vmatprep.subr.mxu0 0.0
  %201 = vmatpush1.msra.mxu0 %v176
  %202 = vmatprep.subr.mxu0 0.0
  %203 = vmatpush1.msra.mxu0 %v177
  %204 = vmatprep.subr.mxu0 0.0
  %205 = vmatpush1.msra.mxu0 %v178
  %206 = vmatprep.subr.mxu0 0.0
  %207 = vmatpush1.msra.mxu0 %v179
  %208 = vmatprep.subr.mxu0 0.0
  %209 = vmatpush1.msra.mxu0 %v180
  %210 = vmatprep.subr.mxu0 0.0
  %211 = vmatpush1.msra.mxu0 %v181
  %212 = vmatprep.subr.mxu0 0.0
  %213 = vmatpush1.msra.mxu0 %v182
  %214 = vmatprep.subr.mxu0 0.0
  %215 = vmatpush1.msra.mxu0 %v183
  %216 = vmatprep.subr.mxu0 0.0
  %217 = vmatpush1.msra.mxu0 %v184
  %218 = vmatprep.subr.mxu0 0.0
  %219 = vmatpush1.msra.mxu0 %v185
  %220 = vmatprep.subr.mxu0 0.0
  %221 = vmatpush1.msra.mxu0 %v186
  %222 = vmatprep.subr.mxu0 0.0
  %223 = vmatpush1.msra.mxu0 %v187
  %224 = vmatprep.subr.mxu0 0.0
  %225 = vmatpush1.msra.mxu0 %v188
  %226 = vmatprep.subr.mxu0 0.0
  %227 = vmatpush1.msra.mxu0 %v189
  %228 = vmatprep.subr.mxu0 0.0
  %229 = vmatpush1.msra.mxu0 %v190
  %230 = vmatprep.subr.mxu0 0.0
  %231 = vmatpush1.msra.mxu0 0.0
  %232 = vmatprep.subr.mxu0 0.0
  %233 = vmatpush1.msra.mxu0 0.0
  %234 = vmatprep.subr.mxu0 0.0
  %235 = vmatpush1.msra.mxu0 0.0
  %236 = vmatprep.subr.mxu0 0.0
  %237 = vmatpush1.msra.mxu0 0.0
  %238 = vmatprep.subr.mxu0 0.0
  %239 = vmatpush1.msra.mxu0 0.0
  %240 = vmatprep.subr.mxu0 0.0
  %241 = vmatpush1.msra.mxu0 0.0
  %242 = vmatprep.subr.mxu0 0.0
  %243 = vmatpush1.msra.mxu0 0.0
  %244 = vmatprep.subr.mxu0 0.0
  %245 = vmatpush1.msra.mxu0 0.0
  %246 = vmatprep.subr.mxu0 0.0
  %247 = vmatpush1.msra.mxu0 0.0
  %248 = vmatprep.subr.mxu0 0.0
  %249 = vmatpush1.msra.mxu0 0.0
  %250 = vmatprep.subr.mxu0 0.0
  %251 = vmatpush1.msra.mxu0 0.0
  %252 = vmatprep.subr.mxu0 0.0
  %253 = vmatpush1.msra.mxu0 0.0
  %254 = vmatprep.subr.mxu0 0.0
  %255 = vmatpush1.msra.mxu0 0.0
  %256 = vmatprep.subr.mxu0 0.0
  %257 = vmatpush1.msra.mxu0 0.0
  %258 = vmatprep.subr.mxu0 0.0
  %259 = vmatpush1.msra.mxu0 0.0
  %260 = vmatprep.subr.mxu0 0.0
  %261 = vmatpush1.msra.mxu0 0.0
  %262 = vmatprep.mubr.f32.mxu0 0.0
  %263 = vmatmul.mubr.f32.gmra.mrb[0].mxu0 %v168
  %v264 = vpop.f32.mrb[0].mxu0
  %v265 = vadd.f32 %v196, %v264
  %v266 = vpop.f32.mrb[0].mxu0
  %267 = vmatprep.mubr.f32.mxu0 0.0
  %268 = vmatmul.mubr.f32.gmra.mrb[0].mxu0 %v169
  %v269 = vpop.f32.mrb[0].mxu0
  %v270 = vadd.f32 %v196, %v269
  %v271 = vpop.f32.mrb[0].mxu0
  %272 = vmatprep.mubr.f32.mxu0 0.0
  %273 = vmatmul.mubr.f32.gmra.mrb[0].mxu0 %v170
  %v274 = vpop.f32.mrb[0].mxu0
  %v275 = vadd.f32 %v196, %v274
  %v276 = vpop.f32.mrb[0].mxu0
  %277 = vmatprep.mubr.f32.mxu0 0.0
  %278 = vmatmul.mubr.f32.gmra.mrb[0].mxu0 %v171
  %v279 = vpop.f32.mrb[0].mxu0
  %v280 = vadd.f32 %v196, %v279
  %v281 = vpop.f32.mrb[0].mxu0
  %282 = vmatprep.mubr.f32.mxu0 0.0
  %283 = vmatmul.mubr.f32.gmra.mrb[0].mxu0 %v172
  %v284 = vpop.f32.mrb[0].mxu0
  %v285 = vadd.f32 %v196, %v284
  %v286 = vpop.f32.mrb[0].mxu0
  %287 = vmatprep.mubr.f32.mxu0 0.0
  %288 = vmatmul.mubr.f32.gmra.mrb[0].mxu0 %v173
  %v289 = vpop.f32.mrb[0].mxu0
  %v290 = vadd.f32 %v196, %v289
  %v291 = vpop.f32.mrb[0].mxu0
  %292 = vmatprep.mubr.f32.mxu0 0.0
  %293 = vmatmul.mubr.f32.gmra.mrb[0].mxu0 %v174
  %v294 = vpop.f32.mrb[0].mxu0
  %v295 = vadd.f32 %v196, %v294
  %v296 = vpop.f32.mrb[0].mxu0
  %297 = vdwg.mxu0
  %v298 = vmax.f32 %v265, 0.0
  %v299 = vmax.f32 %v270, 0.0
  %v300 = vmax.f32 %v275, 0.0
  %v301 = vmax.f32 %v280, 0.0
  %v302 = vmax.f32 %v285, 0.0
  %v303 = vmax.f32 %v290, 0.0
  %v304 = vmax.f32 %v295, 0.0
  %v305 = vld [vmem:[%s5] sm:$0xff]
  %v306 = vld [vmem:[%s5 + $0x8] sm:$0xff]
  %v307 = vld [vmem:[%s5 + $0x10] sm:$0xff]
  %v308 = vld [vmem:[%s5 + $0x18] sm:$0xff]
  %v309 = vld [vmem:[%s5 + $0x20] sm:$0xff]
  %v310 = vld [vmem:[%s5 + $0x28] sm:$0xff]
  %v311 = vld [vmem:[%s5 + $0x30] sm:$0xff]
  %v312 = vld [vmem:[%s5 + $0x38] sm:$0xff]
  %v313 = vld [vmem:[%s6] sm:$0x1]
  %v315 = vlaneseq
  %v316 = vshrl.u32 %v315, 7
  %v317 = vsub.s32 0, %v316
  %v318 = vrot.slane %v313, %v317
  %vm320 = vcmask 523264
  %v322 = vsel %vm320, %v298, 0
  %v325 = vsel %vm320, %v299, 0
  %v328 = vsel %vm320, %v300, 0
  %v331 = vsel %vm320, %v301, 0
  %v334 = vsel %vm320, %v302, 0
  %v337 = vsel %vm320, %v303, 0
  %v340 = vsel %vm320, %v304, 0
  %342 = vmatprep.subr.mxu0 0.0
  %343 = vmatpush1.msra.mxu0 %v305
  %344 = vmatprep.subr.mxu0 0.0
  %345 = vmatpush1.msra.mxu0 %v306
  %346 = vmatprep.subr.mxu0 0.0
  %347 = vmatpush1.msra.mxu0 %v307
  %348 = vmatprep.subr.mxu0 0.0
  %349 = vmatpush1.msra.mxu0 %v308
  %350 = vmatprep.subr.mxu0 0.0
  %351 = vmatpush1.msra.mxu0 %v309
  %352 = vmatprep.subr.mxu0 0.0
  %353 = vmatpush1.msra.mxu0 %v310
  %354 = vmatprep.subr.mxu0 0.0
  %355 = vmatpush1.msra.mxu0 %v311
  %356 = vmatprep.subr.mxu0 0.0
  %357 = vmatpush1.msra.mxu0 %v312
  %358 = vmatprep.subr.mxu0 0.0
  %359 = vmatpush1.msra.mxu0 0.0
  %360 = vmatprep.subr.mxu0 0.0
  %361 = vmatpush1.msra.mxu0 0.0
  %362 = vmatprep.subr.mxu0 0.0
  %363 = vmatpush1.msra.mxu0 0.0
  %364 = vmatprep.subr.mxu0 0.0
  %365 = vmatpush1.msra.mxu0 0.0
  %366 = vmatprep.subr.mxu0 0.0
  %367 = vmatpush1.msra.mxu0 0.0
  %368 = vmatprep.subr.mxu0 0.0
  %369 = vmatpush1.msra.mxu0 0.0
  %370 = vmatprep.subr.mxu0 0.0
  %371 = vmatpush1.msra.mxu0 0.0
  %372 = vmatprep.subr.mxu0 0.0
  %373 = vmatpush1.msra.mxu0 0.0
  %374 = vmatprep.subr.mxu0 0.0
  %375 = vmatpush1.msra.mxu0 0.0
  %376 = vmatprep.subr.mxu0 0.0
  %377 = vmatpush1.msra.mxu0 0.0
  %378 = vmatprep.subr.mxu0 0.0
  %379 = vmatpush1.msra.mxu0 0.0
  %380 = vmatprep.subr.mxu0 0.0
  %381 = vmatpush1.msra.mxu0 0.0
  %382 = vmatprep.subr.mxu0 0.0
  %383 = vmatpush1.msra.mxu0 0.0
  %384 = vmatprep.subr.mxu0 0.0
  %385 = vmatpush1.msra.mxu0 0.0
  %386 = vmatprep.subr.mxu0 0.0
  %387 = vmatpush1.msra.mxu0 0.0
  %388 = vmatprep.subr.mxu0 0.0
  %389 = vmatpush1.msra.mxu0 0.0
  %390 = vmatprep.subr.mxu0 0.0
  %391 = vmatpush1.msra.mxu0 0.0
  %392 = vmatprep.subr.mxu0 0.0
  %393 = vmatpush1.msra.mxu0 0.0
  %394 = vmatprep.subr.mxu0 0.0
  %395 = vmatpush1.msra.mxu0 0.0
  %396 = vmatprep.subr.mxu0 0.0
  %397 = vmatpush1.msra.mxu0 0.0
  %398 = vmatprep.subr.mxu0 0.0
  %399 = vmatpush1.msra.mxu0 0.0
  %400 = vmatprep.subr.mxu0 0.0
  %401 = vmatpush1.msra.mxu0 0.0
  %402 = vmatprep.subr.mxu0 0.0
  %403 = vmatpush1.msra.mxu0 0.0
  %404 = vmatprep.subr.mxu0 0.0
  %405 = vmatpush1.msra.mxu0 0.0
  %406 = vmatprep.mubr.f32.mxu0 0.0
  %407 = vmatmul.mubr.f32.gmra.mrb[0].mxu0 %v322
  %v408 = vpop.f32.mrb[0].mxu0
  %v409 = vadd.f32 %v318, %v408
  %v410 = vpop.f32.mrb[0].mxu0
  %411 = vmatprep.mubr.f32.mxu0 0.0
  %412 = vmatmul.mubr.f32.gmra.mrb[0].mxu0 %v325
  %v413 = vpop.f32.mrb[0].mxu0
  %v414 = vadd.f32 %v318, %v413
  %v415 = vpop.f32.mrb[0].mxu0
  %416 = vmatprep.mubr.f32.mxu0 0.0
  %417 = vmatmul.mubr.f32.gmra.mrb[0].mxu0 %v328
  %v418 = vpop.f32.mrb[0].mxu0
  %v419 = vadd.f32 %v318, %v418
  %v420 = vpop.f32.mrb[0].mxu0
  %421 = vmatprep.mubr.f32.mxu0 0.0
  %422 = vmatmul.mubr.f32.gmra.mrb[0].mxu0 %v331
  %v423 = vpop.f32.mrb[0].mxu0
  %v424 = vadd.f32 %v318, %v423
  %v425 = vpop.f32.mrb[0].mxu0
  %426 = vmatprep.mubr.f32.mxu0 0.0
  %427 = vmatmul.mubr.f32.gmra.mrb[0].mxu0 %v334
  %v428 = vpop.f32.mrb[0].mxu0
  %v429 = vadd.f32 %v318, %v428
  %v430 = vpop.f32.mrb[0].mxu0
  %431 = vmatprep.mubr.f32.mxu0 0.0
  %432 = vmatmul.mubr.f32.gmra.mrb[0].mxu0 %v337
  %v433 = vpop.f32.mrb[0].mxu0
  %v434 = vadd.f32 %v318, %v433
  %v435 = vpop.f32.mrb[0].mxu0
  %436 = vmatprep.mubr.f32.mxu0 0.0
  %437 = vmatmul.mubr.f32.gmra.mrb[0].mxu0 %v340
  %v438 = vpop.f32.mrb[0].mxu0
  %v439 = vadd.f32 %v318, %v438
  %v440 = vpop.f32.mrb[0].mxu0
  %441 = vdwg.mxu0
  %vm442 = vcmask 31744
  %443 = vst.msk [vmem:[%s7] sm:$0xff] %vm442, %v409
  %444 = vst.msk [vmem:[%s7 + $0x8] sm:$0xff] %vm442, %v414
  %445 = vst.msk [vmem:[%s7 + $0x10] sm:$0xff] %vm442, %v419
  %446 = vst.msk [vmem:[%s7 + $0x18] sm:$0xff] %vm442, %v424
  %447 = vst.msk [vmem:[%s7 + $0x20] sm:$0xff] %vm442, %v429
  %448 = vst.msk [vmem:[%s7 + $0x28] sm:$0xff] %vm442, %v434
  %449 = vst.msk [vmem:[%s7 + $0x30] sm:$0xff] %vm442, %v439
  // Predicated region
  $region30: #{tpu_custom_call.1} parent=0 // pred_check
    _
  $region31: #{tpu_custom_call.1} parent=0 // pred_check_branch
    %451 = sbr.rel (0) target = $region33
  $region32: #{tpu_custom_call.1} parent=0 // pred_region
    _
  $region33: #{tpu_custom_call.1} parent=0 // pred_fallthru
    _
  // Predicated region
  $region34: #{tpu_custom_call.1} parent=0 // pred_check
    _
  $region35: #{tpu_custom_call.1} parent=0 // pred_check_branch
    %453 = sbr.rel (0) target = $region37
  $region36: #{tpu_custom_call.1} parent=0 // pred_region
    _
  $region37: #{tpu_custom_call.1} parent=0 // pred_fallthru
    _

</llo_original>
